<compile_context>
chip_gen: v5e
topology: v5e:2x2
jax: 0.10.0
libtpu: 0.0.40
codegen_flags: <defaults>
</compile_context>

<pallas_src>
import jax
import jax.numpy as jnp
from jax.experimental import pallas as pl
from jax.experimental.pallas import tpu as pltpu


def _round8(n):
    return (n + 7) & ~7


def _slab_layout(S, H, L, V):
    """Row-offset layout (8-aligned) of the single packed parameter slab."""
    Vp1 = V + 1
    blocks = [
        ("tab",     S * Vp1, H),      # token->hidden table (absorbs emb @ w_enc)
        ("b_enc",   1,       H),
        ("w_mulv",  H,       2 * L),  # [w_mu | w_logvar]
        ("b_mulv",  1,       2 * L),
        ("w_d1",    L,       H),
        ("b_d1",    1,       H),
        ("w_fused", H,       S * V),  # w_d2 @ blockdiag(w_out)
        ("b_fused", 1,       S * V),
    ]
    width = max(c for _, _, c in blocks)
    layout = {}
    r = 0
    for name, rows, cols in blocks:
        layout[name] = (r, rows, cols)
        r += _round8(rows)
    return layout, _round8(r), width


def _make_vae_kernel(B, S, H, L, V):
    layout, _, _ = _slab_layout(S, H, L, V)
    Vp1 = V + 1
    L2 = 2 * L
    SV = S * V
    r_tab = layout["tab"][0]

    def blk(slab_ref, name):
        r0, rows, cols = layout[name]
        return slab_ref[r0:r0 + rows, :cols]

    def kernel(x_ref, eps_ref, slab_ref, out_ref):
        x = x_ref[...]        # [B, S] int32 tokens
        eps = eps_ref[...]    # [B, L] f32 reparameterization noise

        # --- encoder: token->hidden table select-accumulate (pure VPU) + ReLU ---
        acc = jnp.broadcast_to(blk(slab_ref, "b_enc"), (B, H)).astype(jnp.float32)
        for s in range(S):
            xs = x[:, s:s + 1]                                   # [B, 1]
            for v in range(Vp1):                                 # Vp1 = 5 cheap selects
                idx = r_tab + s * Vp1 + v
                acc = acc + jnp.where(xs == v, slab_ref[idx:idx + 1, :H], 0.0)
        h = jnp.maximum(acc, 0.0)                                # [B, H]

        # --- fused mu/logvar head: one [H, 2L] matmul ---
        mulv = (jnp.dot(h, blk(slab_ref, "w_mulv"),
                        preferred_element_type=jnp.float32)
                + blk(slab_ref, "b_mulv"))                       # [B, 2L]
        mu = mulv[:, :L]
        logvar = mulv[:, L:]

        # --- reparameterization: z = mu + eps * exp(0.5 * logvar) ---
        z = mu + eps * jnp.exp(0.5 * logvar)

        # --- decoder fc1: Linear(L -> H) + ReLU ---
        d1 = jnp.maximum(
            jnp.dot(z, blk(slab_ref, "w_d1"), preferred_element_type=jnp.float32)
            + blk(slab_ref, "b_d1"), 0.0)                        # [B, H]

        # --- fused decoder tail: (H -> E*S) and (E -> V) collapsed into one matmul ---
        recon = (jnp.dot(d1, blk(slab_ref, "w_fused"),
                         preferred_element_type=jnp.float32)
                 + blk(slab_ref, "b_fused"))                     # [B, S*V]

        # single lane-dense store: [B, S*V + 2L]  (recon | mu | logvar)
        out_ref[...] = jnp.concatenate([recon, mulv], axis=-1)

    return kernel


def pack_params(params):
    """One-time packing of all 13 parameter arrays into a single f32 slab.

    Done at param-build time so the per-call graph is just the pallas_call.
    """
    emb = jnp.asarray(params["emb"], jnp.float32)        # [Vp1, E]
    Vp1, E = emb.shape
    V = Vp1 - 1
    w_enc = jnp.asarray(params["w_enc"], jnp.float32)    # [S*E, H]
    SE, H = w_enc.shape
    S = SE // E
    L = params["w_mu"].shape[1]

    # token->hidden table: T[s*Vp1+v] = emb[v] @ w_enc[s*E:(s+1)*E, :]
    tab = jnp.concatenate(
        [emb @ w_enc[s * E:(s + 1) * E, :] for s in range(S)], axis=0)   # [S*Vp1, H]

    w_mulv = jnp.concatenate([params["w_mu"], params["w_lv"]], axis=1)   # [H, 2L]
    b_mulv = jnp.concatenate([params["b_mu"], params["b_lv"]])           # [2L]

    # block-diagonal output projection fused into decoder fc2 (exact: no nonlinearity between)
    bd = jnp.kron(jnp.eye(S, dtype=jnp.float32),
                  jnp.asarray(params["w_out"], jnp.float32))             # [S*E, S*V]
    w_fused = jnp.asarray(params["w_d2"], jnp.float32) @ bd              # [H, S*V]
    b_fused = (jnp.asarray(params["b_d2"], jnp.float32) @ bd
               + jnp.tile(jnp.asarray(params["b_out"], jnp.float32), S)) # [S*V]

    layout, total_rows, width = _slab_layout(S, H, L, V)
    tensors = {
        "tab": tab,
        "b_enc": params["b_enc"].reshape(1, -1),
        "w_mulv": w_mulv,
        "b_mulv": b_mulv.reshape(1, -1),
        "w_d1": params["w_d1"],
        "b_d1": params["b_d1"].reshape(1, -1),
        "w_fused": w_fused,
        "b_fused": b_fused.reshape(1, -1),
    }
    slab = jnp.zeros((total_rows, width), jnp.float32)
    for name, (r0, rows, cols) in layout.items():
        slab = slab.at[r0:r0 + rows, :cols].set(
            jnp.asarray(tensors[name], jnp.float32))
    return slab, (S, E, H, L, V)


def vae_forward(x, eps, slab, dims):
    """x: [B,S] int32 tokens; eps: [B,L] f32 noise; slab: packed params; dims static."""
    S, E, H, L, V = dims
    B = x.shape[0]
    Vp1 = V + 1
    L2 = 2 * L
    SV = S * V

    kernel = _make_vae_kernel(B, S, H, L, V)
    vmem = pl.BlockSpec(memory_space=pltpu.MemorySpace.VMEM)

    flops = 2 * B * (H * L2 + L * H + H * SV) + 2 * B * S * Vp1 * H
    bytes_accessed = (x.size * 4 + eps.size * 4 + slab.size * 4 + B * (SV + L2) * 4)
    cost = pl.CostEstimate(flops=flops, transcendentals=B * L,
                           bytes_accessed=bytes_accessed)

    packed = pl.pallas_call(
        kernel,
        out_shape=jax.ShapeDtypeStruct((B, SV + L2), jnp.float32),
        in_specs=[vmem, vmem, vmem],
        out_specs=vmem,
        cost_estimate=cost,
    )(x, eps, slab)

    recon = packed[:, :SV].reshape(B, S, V)
    mu = packed[:, SV:SV + L]
    logvar = packed[:, SV + L:]
    return recon, mu, logvar


def make_params(key, vocab_size, embed_dim, hidden_dim, latent_dim, seq_len):
    """Weights stored as 2-D [in, out] (i.e. nn.Linear.weight.T); biases 1-D."""
    ks = jax.random.split(key, 12)
    E, H, L, S, V = embed_dim, hidden_dim, latent_dim, seq_len, vocab_size
    f32 = jnp.float32

    def init(k, shape, scale=0.1):
        return (scale * jax.random.normal(k, shape)).astype(f32)

    return {
        "emb":   init(ks[0], (V + 1, E), 1.0),
        "w_enc": init(ks[1], (S * E, H)),     # Linear(E*S, H).weight.T
        "b_enc": init(ks[2], (H,)),
        "w_mu":  init(ks[3], (H, L)),
        "b_mu":  init(ks[4], (L,)),
        "w_lv":  init(ks[5], (H, L)),
        "b_lv":  init(ks[6], (L,)),
        "w_d1":  init(ks[7], (L, H)),
        "b_d1":  init(ks[8], (H,)),
        "w_d2":  init(ks[9], (H, S * E)),     # Linear(H, E*S).weight.T
        "b_d2":  init(ks[10], (S * E,)),
        "w_out": init(ks[11], (E, V)),        # Linear(E, V).weight.T
        "b_out": jnp.zeros((V,), f32),
    }


def vae_reference(x, eps, params):
    """Pure-JAX reference matching the PyTorch VAE.forward semantics."""
    B = x.shape[0]
    emb = params["emb"][x]                                   # [B, S, E] gather
    flat = emb.reshape(B, -1)                                # [B, S*E]
    h = jnp.maximum(flat @ params["w_enc"] + params["b_enc"], 0.0)
    mu = h @ params["w_mu"] + params["b_mu"]
    logvar = h @ params["w_lv"] + params["b_lv"]
    z = mu + eps * jnp.exp(0.5 * logvar)
    d1 = jnp.maximum(z @ params["w_d1"] + params["b_d1"], 0.0)
    d2 = d1 @ params["w_d2"] + params["b_d2"]                # [B, S*E]
    E = params["emb"].shape[1]
    S = d2.shape[1] // E
    out3 = d2.reshape(B, S, E)
    recon = out3 @ params["w_out"] + params["b_out"]
    return recon, mu, logvar


if __name__ == "__main__":
    # Small DNA-VAE-like config.
    vocab_size, embed_dim, hidden_dim, latent_dim, seq_len = 4, 8, 32, 16, 8
    batch = 2

    key = jax.random.PRNGKey(0)
    k_params, k_tok, k_eps = jax.random.split(key, 3)

    params = make_params(k_params, vocab_size, embed_dim, hidden_dim, latent_dim, seq_len)
    x = jax.random.randint(k_tok, (batch, seq_len), 0, vocab_size + 1, dtype=jnp.int32)
    eps = jax.random.normal(k_eps, (batch, latent_dim), dtype=jnp.float32)

    # One-time parameter packing/fusion (outside the per-call path).
    slab, dims = pack_params(params)
    slab = jax.block_until_ready(slab)

    fwd = jax.jit(vae_forward, static_argnames=("dims",))
    recon, mu, logvar = fwd(x, eps, slab, dims=dims)
    jax.block_until_ready((recon, mu, logvar))

    # Correctness check against pure-JAX reference (fusions are exact up to rounding).
    r_ref, mu_ref, lv_ref = vae_reference(x, eps, params)
    assert recon.shape == (batch, seq_len, vocab_size)
    assert mu.shape == (batch, latent_dim) and logvar.shape == (batch, latent_dim)
    assert jnp.allclose(recon, r_ref, atol=1e-4, rtol=1e-4)
    assert jnp.allclose(mu, mu_ref, atol=1e-4, rtol=1e-4)
    assert jnp.allclose(logvar, lv_ref, atol=1e-4, rtol=1e-4)

    print("KERNEL_OK")
</pallas_src>

<mosaic_0001>
module attributes {stable_mosaic.version = 11 : i64} {
  func.func @kernel(%arg0: memref<2x8xi32, #tpu.memory_space<vmem>>, %arg1: memref<2x16xf32, #tpu.memory_space<vmem>>, %arg2: memref<152x32xf32, #tpu.memory_space<vmem>>, %arg3: memref<2x64xf32, #tpu.memory_space<vmem>>) attributes {dimension_semantics = [], scalar_prefetch = 0 : i64, scratch_operands = 0 : i64, tpu.core_type = #tpu.core_type<tc>} {
    %c0 = arith.constant 0 : index
    %c0_0 = arith.constant 0 : index
    %0 = vector.load %arg0[%c0, %c0_0] : memref<2x8xi32, #tpu.memory_space<vmem>>, vector<2x8xi32>
    %c0_1 = arith.constant 0 : index
    %c0_2 = arith.constant 0 : index
    %1 = vector.load %arg1[%c0_1, %c0_2] : memref<2x16xf32, #tpu.memory_space<vmem>>, vector<2x16xf32>
    %c40 = arith.constant 40 : index
    %c0_3 = arith.constant 0 : index
    %2 = vector.load %arg2[%c40, %c0_3] : memref<152x32xf32, #tpu.memory_space<vmem>>, vector<1x32xf32>
    %3 = vector.shape_cast %2 : vector<1x32xf32> to vector<1x32xf32>
    %4 = vector.broadcast %3 : vector<1x32xf32> to vector<2x32xf32>
    %5 = vector.extract_strided_slice %0 {offsets = [0, 0], sizes = [2, 1], strides = [1, 1]} : vector<2x8xi32> to vector<2x1xi32>
    %c0_i32 = arith.constant 0 : i32
    %6 = vector.broadcast %c0_i32 : i32 to vector<2x1xi32>
    %7 = arith.cmpi eq, %5, %6 : vector<2x1xi32>
    %c0_4 = arith.constant 0 : index
    %c0_5 = arith.constant 0 : index
    %8 = vector.load %arg2[%c0_4, %c0_5] : memref<152x32xf32, #tpu.memory_space<vmem>>, vector<1x32xf32>
    %cst = arith.constant 0.000000e+00 : f32
    %9 = vector.shape_cast %7 : vector<2x1xi1> to vector<2x1xi1>
    %10 = vector.broadcast %9 : vector<2x1xi1> to vector<2x32xi1>
    %11 = vector.shape_cast %8 : vector<1x32xf32> to vector<1x32xf32>
    %12 = vector.broadcast %11 : vector<1x32xf32> to vector<2x32xf32>
    %13 = vector.broadcast %cst : f32 to vector<2x32xf32>
    %14 = arith.select %10, %12, %13 : vector<2x32xi1>, vector<2x32xf32>
    %15 = arith.addf %4, %14 : vector<2x32xf32>
    %c1_i32 = arith.constant 1 : i32
    %16 = vector.broadcast %c1_i32 : i32 to vector<2x1xi32>
    %17 = arith.cmpi eq, %5, %16 : vector<2x1xi32>
    %c1 = arith.constant 1 : index
    %c0_6 = arith.constant 0 : index
    %18 = vector.load %arg2[%c1, %c0_6] : memref<152x32xf32, #tpu.memory_space<vmem>>, vector<1x32xf32>
    %cst_7 = arith.constant 0.000000e+00 : f32
    %19 = vector.shape_cast %17 : vector<2x1xi1> to vector<2x1xi1>
    %20 = vector.broadcast %19 : vector<2x1xi1> to vector<2x32xi1>
    %21 = vector.shape_cast %18 : vector<1x32xf32> to vector<1x32xf32>
    %22 = vector.broadcast %21 : vector<1x32xf32> to vector<2x32xf32>
    %23 = vector.broadcast %cst_7 : f32 to vector<2x32xf32>
    %24 = arith.select %20, %22, %23 : vector<2x32xi1>, vector<2x32xf32>
    %25 = arith.addf %15, %24 : vector<2x32xf32>
    %c2_i32 = arith.constant 2 : i32
    %26 = vector.broadcast %c2_i32 : i32 to vector<2x1xi32>
    %27 = arith.cmpi eq, %5, %26 : vector<2x1xi32>
    %c2 = arith.constant 2 : index
    %c0_8 = arith.constant 0 : index
    %28 = vector.load %arg2[%c2, %c0_8] : memref<152x32xf32, #tpu.memory_space<vmem>>, vector<1x32xf32>
    %cst_9 = arith.constant 0.000000e+00 : f32
    %29 = vector.shape_cast %27 : vector<2x1xi1> to vector<2x1xi1>
    %30 = vector.broadcast %29 : vector<2x1xi1> to vector<2x32xi1>
    %31 = vector.shape_cast %28 : vector<1x32xf32> to vector<1x32xf32>
    %32 = vector.broadcast %31 : vector<1x32xf32> to vector<2x32xf32>
    %33 = vector.broadcast %cst_9 : f32 to vector<2x32xf32>
    %34 = arith.select %30, %32, %33 : vector<2x32xi1>, vector<2x32xf32>
    %35 = arith.addf %25, %34 : vector<2x32xf32>
    %c3_i32 = arith.constant 3 : i32
    %36 = vector.broadcast %c3_i32 : i32 to vector<2x1xi32>
    %37 = arith.cmpi eq, %5, %36 : vector<2x1xi32>
    %c3 = arith.constant 3 : index
    %c0_10 = arith.constant 0 : index
    %38 = vector.load %arg2[%c3, %c0_10] : memref<152x32xf32, #tpu.memory_space<vmem>>, vector<1x32xf32>
    %cst_11 = arith.constant 0.000000e+00 : f32
    %39 = vector.shape_cast %37 : vector<2x1xi1> to vector<2x1xi1>
    %40 = vector.broadcast %39 : vector<2x1xi1> to vector<2x32xi1>
    %41 = vector.shape_cast %38 : vector<1x32xf32> to vector<1x32xf32>
    %42 = vector.broadcast %41 : vector<1x32xf32> to vector<2x32xf32>
    %43 = vector.broadcast %cst_11 : f32 to vector<2x32xf32>
    %44 = arith.select %40, %42, %43 : vector<2x32xi1>, vector<2x32xf32>
    %45 = arith.addf %35, %44 : vector<2x32xf32>
    %c4_i32 = arith.constant 4 : i32
    %46 = vector.broadcast %c4_i32 : i32 to vector<2x1xi32>
    %47 = arith.cmpi eq, %5, %46 : vector<2x1xi32>
    %c4 = arith.constant 4 : index
    %c0_12 = arith.constant 0 : index
    %48 = vector.load %arg2[%c4, %c0_12] : memref<152x32xf32, #tpu.memory_space<vmem>>, vector<1x32xf32>
    %cst_13 = arith.constant 0.000000e+00 : f32
    %49 = vector.shape_cast %47 : vector<2x1xi1> to vector<2x1xi1>
    %50 = vector.broadcast %49 : vector<2x1xi1> to vector<2x32xi1>
    %51 = vector.shape_cast %48 : vector<1x32xf32> to vector<1x32xf32>
    %52 = vector.broadcast %51 : vector<1x32xf32> to vector<2x32xf32>
    %53 = vector.broadcast %cst_13 : f32 to vector<2x32xf32>
    %54 = arith.select %50, %52, %53 : vector<2x32xi1>, vector<2x32xf32>
    %55 = arith.addf %45, %54 : vector<2x32xf32>
    %56 = vector.extract_strided_slice %0 {offsets = [0, 1], sizes = [2, 1], strides = [1, 1]} : vector<2x8xi32> to vector<2x1xi32>
    %c0_i32_14 = arith.constant 0 : i32
    %57 = vector.broadcast %c0_i32_14 : i32 to vector<2x1xi32>
    %58 = arith.cmpi eq, %56, %57 : vector<2x1xi32>
    %c5 = arith.constant 5 : index
    %c0_15 = arith.constant 0 : index
    %59 = vector.load %arg2[%c5, %c0_15] : memref<152x32xf32, #tpu.memory_space<vmem>>, vector<1x32xf32>
    %cst_16 = arith.constant 0.000000e+00 : f32
    %60 = vector.shape_cast %58 : vector<2x1xi1> to vector<2x1xi1>
    %61 = vector.broadcast %60 : vector<2x1xi1> to vector<2x32xi1>
    %62 = vector.shape_cast %59 : vector<1x32xf32> to vector<1x32xf32>
    %63 = vector.broadcast %62 : vector<1x32xf32> to vector<2x32xf32>
    %64 = vector.broadcast %cst_16 : f32 to vector<2x32xf32>
    %65 = arith.select %61, %63, %64 : vector<2x32xi1>, vector<2x32xf32>
    %66 = arith.addf %55, %65 : vector<2x32xf32>
    %c1_i32_17 = arith.constant 1 : i32
    %67 = vector.broadcast %c1_i32_17 : i32 to vector<2x1xi32>
    %68 = arith.cmpi eq, %56, %67 : vector<2x1xi32>
    %c6 = arith.constant 6 : index
    %c0_18 = arith.constant 0 : index
    %69 = vector.load %arg2[%c6, %c0_18] : memref<152x32xf32, #tpu.memory_space<vmem>>, vector<1x32xf32>
    %cst_19 = arith.constant 0.000000e+00 : f32
    %70 = vector.shape_cast %68 : vector<2x1xi1> to vector<2x1xi1>
    %71 = vector.broadcast %70 : vector<2x1xi1> to vector<2x32xi1>
    %72 = vector.shape_cast %69 : vector<1x32xf32> to vector<1x32xf32>
    %73 = vector.broadcast %72 : vector<1x32xf32> to vector<2x32xf32>
    %74 = vector.broadcast %cst_19 : f32 to vector<2x32xf32>
    %75 = arith.select %71, %73, %74 : vector<2x32xi1>, vector<2x32xf32>
    %76 = arith.addf %66, %75 : vector<2x32xf32>
    %c2_i32_20 = arith.constant 2 : i32
    %77 = vector.broadcast %c2_i32_20 : i32 to vector<2x1xi32>
    %78 = arith.cmpi eq, %56, %77 : vector<2x1xi32>
    %c7 = arith.constant 7 : index
    %c0_21 = arith.constant 0 : index
    %79 = vector.load %arg2[%c7, %c0_21] : memref<152x32xf32, #tpu.memory_space<vmem>>, vector<1x32xf32>
    %cst_22 = arith.constant 0.000000e+00 : f32
    %80 = vector.shape_cast %78 : vector<2x1xi1> to vector<2x1xi1>
    %81 = vector.broadcast %80 : vector<2x1xi1> to vector<2x32xi1>
    %82 = vector.shape_cast %79 : vector<1x32xf32> to vector<1x32xf32>
    %83 = vector.broadcast %82 : vector<1x32xf32> to vector<2x32xf32>
    %84 = vector.broadcast %cst_22 : f32 to vector<2x32xf32>
    %85 = arith.select %81, %83, %84 : vector<2x32xi1>, vector<2x32xf32>
    %86 = arith.addf %76, %85 : vector<2x32xf32>
    %c3_i32_23 = arith.constant 3 : i32
    %87 = vector.broadcast %c3_i32_23 : i32 to vector<2x1xi32>
    %88 = arith.cmpi eq, %56, %87 : vector<2x1xi32>
    %c8 = arith.constant 8 : index
    %c0_24 = arith.constant 0 : index
    %89 = vector.load %arg2[%c8, %c0_24] : memref<152x32xf32, #tpu.memory_space<vmem>>, vector<1x32xf32>
    %cst_25 = arith.constant 0.000000e+00 : f32
    %90 = vector.shape_cast %88 : vector<2x1xi1> to vector<2x1xi1>
    %91 = vector.broadcast %90 : vector<2x1xi1> to vector<2x32xi1>
    %92 = vector.shape_cast %89 : vector<1x32xf32> to vector<1x32xf32>
    %93 = vector.broadcast %92 : vector<1x32xf32> to vector<2x32xf32>
    %94 = vector.broadcast %cst_25 : f32 to vector<2x32xf32>
    %95 = arith.select %91, %93, %94 : vector<2x32xi1>, vector<2x32xf32>
    %96 = arith.addf %86, %95 : vector<2x32xf32>
    %c4_i32_26 = arith.constant 4 : i32
    %97 = vector.broadcast %c4_i32_26 : i32 to vector<2x1xi32>
    %98 = arith.cmpi eq, %56, %97 : vector<2x1xi32>
    %c9 = arith.constant 9 : index
    %c0_27 = arith.constant 0 : index
    %99 = vector.load %arg2[%c9, %c0_27] : memref<152x32xf32, #tpu.memory_space<vmem>>, vector<1x32xf32>
    %cst_28 = arith.constant 0.000000e+00 : f32
    %100 = vector.shape_cast %98 : vector<2x1xi1> to vector<2x1xi1>
    %101 = vector.broadcast %100 : vector<2x1xi1> to vector<2x32xi1>
    %102 = vector.shape_cast %99 : vector<1x32xf32> to vector<1x32xf32>
    %103 = vector.broadcast %102 : vector<1x32xf32> to vector<2x32xf32>
    %104 = vector.broadcast %cst_28 : f32 to vector<2x32xf32>
    %105 = arith.select %101, %103, %104 : vector<2x32xi1>, vector<2x32xf32>
    %106 = arith.addf %96, %105 : vector<2x32xf32>
    %107 = vector.extract_strided_slice %0 {offsets = [0, 2], sizes = [2, 1], strides = [1, 1]} : vector<2x8xi32> to vector<2x1xi32>
    %c0_i32_29 = arith.constant 0 : i32
    %108 = vector.broadcast %c0_i32_29 : i32 to vector<2x1xi32>
    %109 = arith.cmpi eq, %107, %108 : vector<2x1xi32>
    %c10 = arith.constant 10 : index
    %c0_30 = arith.constant 0 : index
    %110 = vector.load %arg2[%c10, %c0_30] : memref<152x32xf32, #tpu.memory_space<vmem>>, vector<1x32xf32>
    %cst_31 = arith.constant 0.000000e+00 : f32
    %111 = vector.shape_cast %109 : vector<2x1xi1> to vector<2x1xi1>
    %112 = vector.broadcast %111 : vector<2x1xi1> to vector<2x32xi1>
    %113 = vector.shape_cast %110 : vector<1x32xf32> to vector<1x32xf32>
    %114 = vector.broadcast %113 : vector<1x32xf32> to vector<2x32xf32>
    %115 = vector.broadcast %cst_31 : f32 to vector<2x32xf32>
    %116 = arith.select %112, %114, %115 : vector<2x32xi1>, vector<2x32xf32>
    %117 = arith.addf %106, %116 : vector<2x32xf32>
    %c1_i32_32 = arith.constant 1 : i32
    %118 = vector.broadcast %c1_i32_32 : i32 to vector<2x1xi32>
    %119 = arith.cmpi eq, %107, %118 : vector<2x1xi32>
    %c11 = arith.constant 11 : index
    %c0_33 = arith.constant 0 : index
    %120 = vector.load %arg2[%c11, %c0_33] : memref<152x32xf32, #tpu.memory_space<vmem>>, vector<1x32xf32>
    %cst_34 = arith.constant 0.000000e+00 : f32
    %121 = vector.shape_cast %119 : vector<2x1xi1> to vector<2x1xi1>
    %122 = vector.broadcast %121 : vector<2x1xi1> to vector<2x32xi1>
    %123 = vector.shape_cast %120 : vector<1x32xf32> to vector<1x32xf32>
    %124 = vector.broadcast %123 : vector<1x32xf32> to vector<2x32xf32>
    %125 = vector.broadcast %cst_34 : f32 to vector<2x32xf32>
    %126 = arith.select %122, %124, %125 : vector<2x32xi1>, vector<2x32xf32>
    %127 = arith.addf %117, %126 : vector<2x32xf32>
    %c2_i32_35 = arith.constant 2 : i32
    %128 = vector.broadcast %c2_i32_35 : i32 to vector<2x1xi32>
    %129 = arith.cmpi eq, %107, %128 : vector<2x1xi32>
    %c12 = arith.constant 12 : index
    %c0_36 = arith.constant 0 : index
    %130 = vector.load %arg2[%c12, %c0_36] : memref<152x32xf32, #tpu.memory_space<vmem>>, vector<1x32xf32>
    %cst_37 = arith.constant 0.000000e+00 : f32
    %131 = vector.shape_cast %129 : vector<2x1xi1> to vector<2x1xi1>
    %132 = vector.broadcast %131 : vector<2x1xi1> to vector<2x32xi1>
    %133 = vector.shape_cast %130 : vector<1x32xf32> to vector<1x32xf32>
    %134 = vector.broadcast %133 : vector<1x32xf32> to vector<2x32xf32>
    %135 = vector.broadcast %cst_37 : f32 to vector<2x32xf32>
    %136 = arith.select %132, %134, %135 : vector<2x32xi1>, vector<2x32xf32>
    %137 = arith.addf %127, %136 : vector<2x32xf32>
    %c3_i32_38 = arith.constant 3 : i32
    %138 = vector.broadcast %c3_i32_38 : i32 to vector<2x1xi32>
    %139 = arith.cmpi eq, %107, %138 : vector<2x1xi32>
    %c13 = arith.constant 13 : index
    %c0_39 = arith.constant 0 : index
    %140 = vector.load %arg2[%c13, %c0_39] : memref<152x32xf32, #tpu.memory_space<vmem>>, vector<1x32xf32>
    %cst_40 = arith.constant 0.000000e+00 : f32
    %141 = vector.shape_cast %139 : vector<2x1xi1> to vector<2x1xi1>
    %142 = vector.broadcast %141 : vector<2x1xi1> to vector<2x32xi1>
    %143 = vector.shape_cast %140 : vector<1x32xf32> to vector<1x32xf32>
    %144 = vector.broadcast %143 : vector<1x32xf32> to vector<2x32xf32>
    %145 = vector.broadcast %cst_40 : f32 to vector<2x32xf32>
    %146 = arith.select %142, %144, %145 : vector<2x32xi1>, vector<2x32xf32>
    %147 = arith.addf %137, %146 : vector<2x32xf32>
    %c4_i32_41 = arith.constant 4 : i32
    %148 = vector.broadcast %c4_i32_41 : i32 to vector<2x1xi32>
    %149 = arith.cmpi eq, %107, %148 : vector<2x1xi32>
    %c14 = arith.constant 14 : index
    %c0_42 = arith.constant 0 : index
    %150 = vector.load %arg2[%c14, %c0_42] : memref<152x32xf32, #tpu.memory_space<vmem>>, vector<1x32xf32>
    %cst_43 = arith.constant 0.000000e+00 : f32
    %151 = vector.shape_cast %149 : vector<2x1xi1> to vector<2x1xi1>
    %152 = vector.broadcast %151 : vector<2x1xi1> to vector<2x32xi1>
    %153 = vector.shape_cast %150 : vector<1x32xf32> to vector<1x32xf32>
    %154 = vector.broadcast %153 : vector<1x32xf32> to vector<2x32xf32>
    %155 = vector.broadcast %cst_43 : f32 to vector<2x32xf32>
    %156 = arith.select %152, %154, %155 : vector<2x32xi1>, vector<2x32xf32>
    %157 = arith.addf %147, %156 : vector<2x32xf32>
    %158 = vector.extract_strided_slice %0 {offsets = [0, 3], sizes = [2, 1], strides = [1, 1]} : vector<2x8xi32> to vector<2x1xi32>
    %c0_i32_44 = arith.constant 0 : i32
    %159 = vector.broadcast %c0_i32_44 : i32 to vector<2x1xi32>
    %160 = arith.cmpi eq, %158, %159 : vector<2x1xi32>
    %c15 = arith.constant 15 : index
    %c0_45 = arith.constant 0 : index
    %161 = vector.load %arg2[%c15, %c0_45] : memref<152x32xf32, #tpu.memory_space<vmem>>, vector<1x32xf32>
    %cst_46 = arith.constant 0.000000e+00 : f32
    %162 = vector.shape_cast %160 : vector<2x1xi1> to vector<2x1xi1>
    %163 = vector.broadcast %162 : vector<2x1xi1> to vector<2x32xi1>
    %164 = vector.shape_cast %161 : vector<1x32xf32> to vector<1x32xf32>
    %165 = vector.broadcast %164 : vector<1x32xf32> to vector<2x32xf32>
    %166 = vector.broadcast %cst_46 : f32 to vector<2x32xf32>
    %167 = arith.select %163, %165, %166 : vector<2x32xi1>, vector<2x32xf32>
    %168 = arith.addf %157, %167 : vector<2x32xf32>
    %c1_i32_47 = arith.constant 1 : i32
    %169 = vector.broadcast %c1_i32_47 : i32 to vector<2x1xi32>
    %170 = arith.cmpi eq, %158, %169 : vector<2x1xi32>
    %c16 = arith.constant 16 : index
    %c0_48 = arith.constant 0 : index
    %171 = vector.load %arg2[%c16, %c0_48] : memref<152x32xf32, #tpu.memory_space<vmem>>, vector<1x32xf32>
    %cst_49 = arith.constant 0.000000e+00 : f32
    %172 = vector.shape_cast %170 : vector<2x1xi1> to vector<2x1xi1>
    %173 = vector.broadcast %172 : vector<2x1xi1> to vector<2x32xi1>
    %174 = vector.shape_cast %171 : vector<1x32xf32> to vector<1x32xf32>
    %175 = vector.broadcast %174 : vector<1x32xf32> to vector<2x32xf32>
    %176 = vector.broadcast %cst_49 : f32 to vector<2x32xf32>
    %177 = arith.select %173, %175, %176 : vector<2x32xi1>, vector<2x32xf32>
    %178 = arith.addf %168, %177 : vector<2x32xf32>
    %c2_i32_50 = arith.constant 2 : i32
    %179 = vector.broadcast %c2_i32_50 : i32 to vector<2x1xi32>
    %180 = arith.cmpi eq, %158, %179 : vector<2x1xi32>
    %c17 = arith.constant 17 : index
    %c0_51 = arith.constant 0 : index
    %181 = vector.load %arg2[%c17, %c0_51] : memref<152x32xf32, #tpu.memory_space<vmem>>, vector<1x32xf32>
    %cst_52 = arith.constant 0.000000e+00 : f32
    %182 = vector.shape_cast %180 : vector<2x1xi1> to vector<2x1xi1>
    %183 = vector.broadcast %182 : vector<2x1xi1> to vector<2x32xi1>
    %184 = vector.shape_cast %181 : vector<1x32xf32> to vector<1x32xf32>
    %185 = vector.broadcast %184 : vector<1x32xf32> to vector<2x32xf32>
    %186 = vector.broadcast %cst_52 : f32 to vector<2x32xf32>
    %187 = arith.select %183, %185, %186 : vector<2x32xi1>, vector<2x32xf32>
    %188 = arith.addf %178, %187 : vector<2x32xf32>
    %c3_i32_53 = arith.constant 3 : i32
    %189 = vector.broadcast %c3_i32_53 : i32 to vector<2x1xi32>
    %190 = arith.cmpi eq, %158, %189 : vector<2x1xi32>
    %c18 = arith.constant 18 : index
    %c0_54 = arith.constant 0 : index
    %191 = vector.load %arg2[%c18, %c0_54] : memref<152x32xf32, #tpu.memory_space<vmem>>, vector<1x32xf32>
    %cst_55 = arith.constant 0.000000e+00 : f32
    %192 = vector.shape_cast %190 : vector<2x1xi1> to vector<2x1xi1>
    %193 = vector.broadcast %192 : vector<2x1xi1> to vector<2x32xi1>
    %194 = vector.shape_cast %191 : vector<1x32xf32> to vector<1x32xf32>
    %195 = vector.broadcast %194 : vector<1x32xf32> to vector<2x32xf32>
    %196 = vector.broadcast %cst_55 : f32 to vector<2x32xf32>
    %197 = arith.select %193, %195, %196 : vector<2x32xi1>, vector<2x32xf32>
    %198 = arith.addf %188, %197 : vector<2x32xf32>
    %c4_i32_56 = arith.constant 4 : i32
    %199 = vector.broadcast %c4_i32_56 : i32 to vector<2x1xi32>
    %200 = arith.cmpi eq, %158, %199 : vector<2x1xi32>
    %c19 = arith.constant 19 : index
    %c0_57 = arith.constant 0 : index
    %201 = vector.load %arg2[%c19, %c0_57] : memref<152x32xf32, #tpu.memory_space<vmem>>, vector<1x32xf32>
    %cst_58 = arith.constant 0.000000e+00 : f32
    %202 = vector.shape_cast %200 : vector<2x1xi1> to vector<2x1xi1>
    %203 = vector.broadcast %202 : vector<2x1xi1> to vector<2x32xi1>
    %204 = vector.shape_cast %201 : vector<1x32xf32> to vector<1x32xf32>
    %205 = vector.broadcast %204 : vector<1x32xf32> to vector<2x32xf32>
    %206 = vector.broadcast %cst_58 : f32 to vector<2x32xf32>
    %207 = arith.select %203, %205, %206 : vector<2x32xi1>, vector<2x32xf32>
    %208 = arith.addf %198, %207 : vector<2x32xf32>
    %209 = vector.extract_strided_slice %0 {offsets = [0, 4], sizes = [2, 1], strides = [1, 1]} : vector<2x8xi32> to vector<2x1xi32>
    %c0_i32_59 = arith.constant 0 : i32
    %210 = vector.broadcast %c0_i32_59 : i32 to vector<2x1xi32>
    %211 = arith.cmpi eq, %209, %210 : vector<2x1xi32>
    %c20 = arith.constant 20 : index
    %c0_60 = arith.constant 0 : index
    %212 = vector.load %arg2[%c20, %c0_60] : memref<152x32xf32, #tpu.memory_space<vmem>>, vector<1x32xf32>
    %cst_61 = arith.constant 0.000000e+00 : f32
    %213 = vector.shape_cast %211 : vector<2x1xi1> to vector<2x1xi1>
    %214 = vector.broadcast %213 : vector<2x1xi1> to vector<2x32xi1>
    %215 = vector.shape_cast %212 : vector<1x32xf32> to vector<1x32xf32>
    %216 = vector.broadcast %215 : vector<1x32xf32> to vector<2x32xf32>
    %217 = vector.broadcast %cst_61 : f32 to vector<2x32xf32>
    %218 = arith.select %214, %216, %217 : vector<2x32xi1>, vector<2x32xf32>
    %219 = arith.addf %208, %218 : vector<2x32xf32>
    %c1_i32_62 = arith.constant 1 : i32
    %220 = vector.broadcast %c1_i32_62 : i32 to vector<2x1xi32>
    %221 = arith.cmpi eq, %209, %220 : vector<2x1xi32>
    %c21 = arith.constant 21 : index
    %c0_63 = arith.constant 0 : index
    %222 = vector.load %arg2[%c21, %c0_63] : memref<152x32xf32, #tpu.memory_space<vmem>>, vector<1x32xf32>
    %cst_64 = arith.constant 0.000000e+00 : f32
    %223 = vector.shape_cast %221 : vector<2x1xi1> to vector<2x1xi1>
    %224 = vector.broadcast %223 : vector<2x1xi1> to vector<2x32xi1>
    %225 = vector.shape_cast %222 : vector<1x32xf32> to vector<1x32xf32>
    %226 = vector.broadcast %225 : vector<1x32xf32> to vector<2x32xf32>
    %227 = vector.broadcast %cst_64 : f32 to vector<2x32xf32>
    %228 = arith.select %224, %226, %227 : vector<2x32xi1>, vector<2x32xf32>
    %229 = arith.addf %219, %228 : vector<2x32xf32>
    %c2_i32_65 = arith.constant 2 : i32
    %230 = vector.broadcast %c2_i32_65 : i32 to vector<2x1xi32>
    %231 = arith.cmpi eq, %209, %230 : vector<2x1xi32>
    %c22 = arith.constant 22 : index
    %c0_66 = arith.constant 0 : index
    %232 = vector.load %arg2[%c22, %c0_66] : memref<152x32xf32, #tpu.memory_space<vmem>>, vector<1x32xf32>
    %cst_67 = arith.constant 0.000000e+00 : f32
    %233 = vector.shape_cast %231 : vector<2x1xi1> to vector<2x1xi1>
    %234 = vector.broadcast %233 : vector<2x1xi1> to vector<2x32xi1>
    %235 = vector.shape_cast %232 : vector<1x32xf32> to vector<1x32xf32>
    %236 = vector.broadcast %235 : vector<1x32xf32> to vector<2x32xf32>
    %237 = vector.broadcast %cst_67 : f32 to vector<2x32xf32>
    %238 = arith.select %234, %236, %237 : vector<2x32xi1>, vector<2x32xf32>
    %239 = arith.addf %229, %238 : vector<2x32xf32>
    %c3_i32_68 = arith.constant 3 : i32
    %240 = vector.broadcast %c3_i32_68 : i32 to vector<2x1xi32>
    %241 = arith.cmpi eq, %209, %240 : vector<2x1xi32>
    %c23 = arith.constant 23 : index
    %c0_69 = arith.constant 0 : index
    %242 = vector.load %arg2[%c23, %c0_69] : memref<152x32xf32, #tpu.memory_space<vmem>>, vector<1x32xf32>
    %cst_70 = arith.constant 0.000000e+00 : f32
    %243 = vector.shape_cast %241 : vector<2x1xi1> to vector<2x1xi1>
    %244 = vector.broadcast %243 : vector<2x1xi1> to vector<2x32xi1>
    %245 = vector.shape_cast %242 : vector<1x32xf32> to vector<1x32xf32>
    %246 = vector.broadcast %245 : vector<1x32xf32> to vector<2x32xf32>
    %247 = vector.broadcast %cst_70 : f32 to vector<2x32xf32>
    %248 = arith.select %244, %246, %247 : vector<2x32xi1>, vector<2x32xf32>
    %249 = arith.addf %239, %248 : vector<2x32xf32>
    %c4_i32_71 = arith.constant 4 : i32
    %250 = vector.broadcast %c4_i32_71 : i32 to vector<2x1xi32>
    %251 = arith.cmpi eq, %209, %250 : vector<2x1xi32>
    %c24 = arith.constant 24 : index
    %c0_72 = arith.constant 0 : index
    %252 = vector.load %arg2[%c24, %c0_72] : memref<152x32xf32, #tpu.memory_space<vmem>>, vector<1x32xf32>
    %cst_73 = arith.constant 0.000000e+00 : f32
    %253 = vector.shape_cast %251 : vector<2x1xi1> to vector<2x1xi1>
    %254 = vector.broadcast %253 : vector<2x1xi1> to vector<2x32xi1>
    %255 = vector.shape_cast %252 : vector<1x32xf32> to vector<1x32xf32>
    %256 = vector.broadcast %255 : vector<1x32xf32> to vector<2x32xf32>
    %257 = vector.broadcast %cst_73 : f32 to vector<2x32xf32>
    %258 = arith.select %254, %256, %257 : vector<2x32xi1>, vector<2x32xf32>
    %259 = arith.addf %249, %258 : vector<2x32xf32>
    %260 = vector.extract_strided_slice %0 {offsets = [0, 5], sizes = [2, 1], strides = [1, 1]} : vector<2x8xi32> to vector<2x1xi32>
    %c0_i32_74 = arith.constant 0 : i32
    %261 = vector.broadcast %c0_i32_74 : i32 to vector<2x1xi32>
    %262 = arith.cmpi eq, %260, %261 : vector<2x1xi32>
    %c25 = arith.constant 25 : index
    %c0_75 = arith.constant 0 : index
    %263 = vector.load %arg2[%c25, %c0_75] : memref<152x32xf32, #tpu.memory_space<vmem>>, vector<1x32xf32>
    %cst_76 = arith.constant 0.000000e+00 : f32
    %264 = vector.shape_cast %262 : vector<2x1xi1> to vector<2x1xi1>
    %265 = vector.broadcast %264 : vector<2x1xi1> to vector<2x32xi1>
    %266 = vector.shape_cast %263 : vector<1x32xf32> to vector<1x32xf32>
    %267 = vector.broadcast %266 : vector<1x32xf32> to vector<2x32xf32>
    %268 = vector.broadcast %cst_76 : f32 to vector<2x32xf32>
    %269 = arith.select %265, %267, %268 : vector<2x32xi1>, vector<2x32xf32>
    %270 = arith.addf %259, %269 : vector<2x32xf32>
    %c1_i32_77 = arith.constant 1 : i32
    %271 = vector.broadcast %c1_i32_77 : i32 to vector<2x1xi32>
    %272 = arith.cmpi eq, %260, %271 : vector<2x1xi32>
    %c26 = arith.constant 26 : index
    %c0_78 = arith.constant 0 : index
    %273 = vector.load %arg2[%c26, %c0_78] : memref<152x32xf32, #tpu.memory_space<vmem>>, vector<1x32xf32>
    %cst_79 = arith.constant 0.000000e+00 : f32
    %274 = vector.shape_cast %272 : vector<2x1xi1> to vector<2x1xi1>
    %275 = vector.broadcast %274 : vector<2x1xi1> to vector<2x32xi1>
    %276 = vector.shape_cast %273 : vector<1x32xf32> to vector<1x32xf32>
    %277 = vector.broadcast %276 : vector<1x32xf32> to vector<2x32xf32>
    %278 = vector.broadcast %cst_79 : f32 to vector<2x32xf32>
    %279 = arith.select %275, %277, %278 : vector<2x32xi1>, vector<2x32xf32>
    %280 = arith.addf %270, %279 : vector<2x32xf32>
    %c2_i32_80 = arith.constant 2 : i32
    %281 = vector.broadcast %c2_i32_80 : i32 to vector<2x1xi32>
    %282 = arith.cmpi eq, %260, %281 : vector<2x1xi32>
    %c27 = arith.constant 27 : index
    %c0_81 = arith.constant 0 : index
    %283 = vector.load %arg2[%c27, %c0_81] : memref<152x32xf32, #tpu.memory_space<vmem>>, vector<1x32xf32>
    %cst_82 = arith.constant 0.000000e+00 : f32
    %284 = vector.shape_cast %282 : vector<2x1xi1> to vector<2x1xi1>
    %285 = vector.broadcast %284 : vector<2x1xi1> to vector<2x32xi1>
    %286 = vector.shape_cast %283 : vector<1x32xf32> to vector<1x32xf32>
    %287 = vector.broadcast %286 : vector<1x32xf32> to vector<2x32xf32>
    %288 = vector.broadcast %cst_82 : f32 to vector<2x32xf32>
    %289 = arith.select %285, %287, %288 : vector<2x32xi1>, vector<2x32xf32>
    %290 = arith.addf %280, %289 : vector<2x32xf32>
    %c3_i32_83 = arith.constant 3 : i32
    %291 = vector.broadcast %c3_i32_83 : i32 to vector<2x1xi32>
    %292 = arith.cmpi eq, %260, %291 : vector<2x1xi32>
    %c28 = arith.constant 28 : index
    %c0_84 = arith.constant 0 : index
    %293 = vector.load %arg2[%c28, %c0_84] : memref<152x32xf32, #tpu.memory_space<vmem>>, vector<1x32xf32>
    %cst_85 = arith.constant 0.000000e+00 : f32
    %294 = vector.shape_cast %292 : vector<2x1xi1> to vector<2x1xi1>
    %295 = vector.broadcast %294 : vector<2x1xi1> to vector<2x32xi1>
    %296 = vector.shape_cast %293 : vector<1x32xf32> to vector<1x32xf32>
    %297 = vector.broadcast %296 : vector<1x32xf32> to vector<2x32xf32>
    %298 = vector.broadcast %cst_85 : f32 to vector<2x32xf32>
    %299 = arith.select %295, %297, %298 : vector<2x32xi1>, vector<2x32xf32>
    %300 = arith.addf %290, %299 : vector<2x32xf32>
    %c4_i32_86 = arith.constant 4 : i32
    %301 = vector.broadcast %c4_i32_86 : i32 to vector<2x1xi32>
    %302 = arith.cmpi eq, %260, %301 : vector<2x1xi32>
    %c29 = arith.constant 29 : index
    %c0_87 = arith.constant 0 : index
    %303 = vector.load %arg2[%c29, %c0_87] : memref<152x32xf32, #tpu.memory_space<vmem>>, vector<1x32xf32>
    %cst_88 = arith.constant 0.000000e+00 : f32
    %304 = vector.shape_cast %302 : vector<2x1xi1> to vector<2x1xi1>
    %305 = vector.broadcast %304 : vector<2x1xi1> to vector<2x32xi1>
    %306 = vector.shape_cast %303 : vector<1x32xf32> to vector<1x32xf32>
    %307 = vector.broadcast %306 : vector<1x32xf32> to vector<2x32xf32>
    %308 = vector.broadcast %cst_88 : f32 to vector<2x32xf32>
    %309 = arith.select %305, %307, %308 : vector<2x32xi1>, vector<2x32xf32>
    %310 = arith.addf %300, %309 : vector<2x32xf32>
    %311 = vector.extract_strided_slice %0 {offsets = [0, 6], sizes = [2, 1], strides = [1, 1]} : vector<2x8xi32> to vector<2x1xi32>
    %c0_i32_89 = arith.constant 0 : i32
    %312 = vector.broadcast %c0_i32_89 : i32 to vector<2x1xi32>
    %313 = arith.cmpi eq, %311, %312 : vector<2x1xi32>
    %c30 = arith.constant 30 : index
    %c0_90 = arith.constant 0 : index
    %314 = vector.load %arg2[%c30, %c0_90] : memref<152x32xf32, #tpu.memory_space<vmem>>, vector<1x32xf32>
    %cst_91 = arith.constant 0.000000e+00 : f32
    %315 = vector.shape_cast %313 : vector<2x1xi1> to vector<2x1xi1>
    %316 = vector.broadcast %315 : vector<2x1xi1> to vector<2x32xi1>
    %317 = vector.shape_cast %314 : vector<1x32xf32> to vector<1x32xf32>
    %318 = vector.broadcast %317 : vector<1x32xf32> to vector<2x32xf32>
    %319 = vector.broadcast %cst_91 : f32 to vector<2x32xf32>
    %320 = arith.select %316, %318, %319 : vector<2x32xi1>, vector<2x32xf32>
    %321 = arith.addf %310, %320 : vector<2x32xf32>
    %c1_i32_92 = arith.constant 1 : i32
    %322 = vector.broadcast %c1_i32_92 : i32 to vector<2x1xi32>
    %323 = arith.cmpi eq, %311, %322 : vector<2x1xi32>
    %c31 = arith.constant 31 : index
    %c0_93 = arith.constant 0 : index
    %324 = vector.load %arg2[%c31, %c0_93] : memref<152x32xf32, #tpu.memory_space<vmem>>, vector<1x32xf32>
    %cst_94 = arith.constant 0.000000e+00 : f32
    %325 = vector.shape_cast %323 : vector<2x1xi1> to vector<2x1xi1>
    %326 = vector.broadcast %325 : vector<2x1xi1> to vector<2x32xi1>
    %327 = vector.shape_cast %324 : vector<1x32xf32> to vector<1x32xf32>
    %328 = vector.broadcast %327 : vector<1x32xf32> to vector<2x32xf32>
    %329 = vector.broadcast %cst_94 : f32 to vector<2x32xf32>
    %330 = arith.select %326, %328, %329 : vector<2x32xi1>, vector<2x32xf32>
    %331 = arith.addf %321, %330 : vector<2x32xf32>
    %c2_i32_95 = arith.constant 2 : i32
    %332 = vector.broadcast %c2_i32_95 : i32 to vector<2x1xi32>
    %333 = arith.cmpi eq, %311, %332 : vector<2x1xi32>
    %c32 = arith.constant 32 : index
    %c0_96 = arith.constant 0 : index
    %334 = vector.load %arg2[%c32, %c0_96] : memref<152x32xf32, #tpu.memory_space<vmem>>, vector<1x32xf32>
    %cst_97 = arith.constant 0.000000e+00 : f32
    %335 = vector.shape_cast %333 : vector<2x1xi1> to vector<2x1xi1>
    %336 = vector.broadcast %335 : vector<2x1xi1> to vector<2x32xi1>
    %337 = vector.shape_cast %334 : vector<1x32xf32> to vector<1x32xf32>
    %338 = vector.broadcast %337 : vector<1x32xf32> to vector<2x32xf32>
    %339 = vector.broadcast %cst_97 : f32 to vector<2x32xf32>
    %340 = arith.select %336, %338, %339 : vector<2x32xi1>, vector<2x32xf32>
    %341 = arith.addf %331, %340 : vector<2x32xf32>
    %c3_i32_98 = arith.constant 3 : i32
    %342 = vector.broadcast %c3_i32_98 : i32 to vector<2x1xi32>
    %343 = arith.cmpi eq, %311, %342 : vector<2x1xi32>
    %c33 = arith.constant 33 : index
    %c0_99 = arith.constant 0 : index
    %344 = vector.load %arg2[%c33, %c0_99] : memref<152x32xf32, #tpu.memory_space<vmem>>, vector<1x32xf32>
    %cst_100 = arith.constant 0.000000e+00 : f32
    %345 = vector.shape_cast %343 : vector<2x1xi1> to vector<2x1xi1>
    %346 = vector.broadcast %345 : vector<2x1xi1> to vector<2x32xi1>
    %347 = vector.shape_cast %344 : vector<1x32xf32> to vector<1x32xf32>
    %348 = vector.broadcast %347 : vector<1x32xf32> to vector<2x32xf32>
    %349 = vector.broadcast %cst_100 : f32 to vector<2x32xf32>
    %350 = arith.select %346, %348, %349 : vector<2x32xi1>, vector<2x32xf32>
    %351 = arith.addf %341, %350 : vector<2x32xf32>
    %c4_i32_101 = arith.constant 4 : i32
    %352 = vector.broadcast %c4_i32_101 : i32 to vector<2x1xi32>
    %353 = arith.cmpi eq, %311, %352 : vector<2x1xi32>
    %c34 = arith.constant 34 : index
    %c0_102 = arith.constant 0 : index
    %354 = vector.load %arg2[%c34, %c0_102] : memref<152x32xf32, #tpu.memory_space<vmem>>, vector<1x32xf32>
    %cst_103 = arith.constant 0.000000e+00 : f32
    %355 = vector.shape_cast %353 : vector<2x1xi1> to vector<2x1xi1>
    %356 = vector.broadcast %355 : vector<2x1xi1> to vector<2x32xi1>
    %357 = vector.shape_cast %354 : vector<1x32xf32> to vector<1x32xf32>
    %358 = vector.broadcast %357 : vector<1x32xf32> to vector<2x32xf32>
    %359 = vector.broadcast %cst_103 : f32 to vector<2x32xf32>
    %360 = arith.select %356, %358, %359 : vector<2x32xi1>, vector<2x32xf32>
    %361 = arith.addf %351, %360 : vector<2x32xf32>
    %362 = vector.extract_strided_slice %0 {offsets = [0, 7], sizes = [2, 1], strides = [1, 1]} : vector<2x8xi32> to vector<2x1xi32>
    %c0_i32_104 = arith.constant 0 : i32
    %363 = vector.broadcast %c0_i32_104 : i32 to vector<2x1xi32>
    %364 = arith.cmpi eq, %362, %363 : vector<2x1xi32>
    %c35 = arith.constant 35 : index
    %c0_105 = arith.constant 0 : index
    %365 = vector.load %arg2[%c35, %c0_105] : memref<152x32xf32, #tpu.memory_space<vmem>>, vector<1x32xf32>
    %cst_106 = arith.constant 0.000000e+00 : f32
    %366 = vector.shape_cast %364 : vector<2x1xi1> to vector<2x1xi1>
    %367 = vector.broadcast %366 : vector<2x1xi1> to vector<2x32xi1>
    %368 = vector.shape_cast %365 : vector<1x32xf32> to vector<1x32xf32>
    %369 = vector.broadcast %368 : vector<1x32xf32> to vector<2x32xf32>
    %370 = vector.broadcast %cst_106 : f32 to vector<2x32xf32>
    %371 = arith.select %367, %369, %370 : vector<2x32xi1>, vector<2x32xf32>
    %372 = arith.addf %361, %371 : vector<2x32xf32>
    %c1_i32_107 = arith.constant 1 : i32
    %373 = vector.broadcast %c1_i32_107 : i32 to vector<2x1xi32>
    %374 = arith.cmpi eq, %362, %373 : vector<2x1xi32>
    %c36 = arith.constant 36 : index
    %c0_108 = arith.constant 0 : index
    %375 = vector.load %arg2[%c36, %c0_108] : memref<152x32xf32, #tpu.memory_space<vmem>>, vector<1x32xf32>
    %cst_109 = arith.constant 0.000000e+00 : f32
    %376 = vector.shape_cast %374 : vector<2x1xi1> to vector<2x1xi1>
    %377 = vector.broadcast %376 : vector<2x1xi1> to vector<2x32xi1>
    %378 = vector.shape_cast %375 : vector<1x32xf32> to vector<1x32xf32>
    %379 = vector.broadcast %378 : vector<1x32xf32> to vector<2x32xf32>
    %380 = vector.broadcast %cst_109 : f32 to vector<2x32xf32>
    %381 = arith.select %377, %379, %380 : vector<2x32xi1>, vector<2x32xf32>
    %382 = arith.addf %372, %381 : vector<2x32xf32>
    %c2_i32_110 = arith.constant 2 : i32
    %383 = vector.broadcast %c2_i32_110 : i32 to vector<2x1xi32>
    %384 = arith.cmpi eq, %362, %383 : vector<2x1xi32>
    %c37 = arith.constant 37 : index
    %c0_111 = arith.constant 0 : index
    %385 = vector.load %arg2[%c37, %c0_111] : memref<152x32xf32, #tpu.memory_space<vmem>>, vector<1x32xf32>
    %cst_112 = arith.constant 0.000000e+00 : f32
    %386 = vector.shape_cast %384 : vector<2x1xi1> to vector<2x1xi1>
    %387 = vector.broadcast %386 : vector<2x1xi1> to vector<2x32xi1>
    %388 = vector.shape_cast %385 : vector<1x32xf32> to vector<1x32xf32>
    %389 = vector.broadcast %388 : vector<1x32xf32> to vector<2x32xf32>
    %390 = vector.broadcast %cst_112 : f32 to vector<2x32xf32>
    %391 = arith.select %387, %389, %390 : vector<2x32xi1>, vector<2x32xf32>
    %392 = arith.addf %382, %391 : vector<2x32xf32>
    %c3_i32_113 = arith.constant 3 : i32
    %393 = vector.broadcast %c3_i32_113 : i32 to vector<2x1xi32>
    %394 = arith.cmpi eq, %362, %393 : vector<2x1xi32>
    %c38 = arith.constant 38 : index
    %c0_114 = arith.constant 0 : index
    %395 = vector.load %arg2[%c38, %c0_114] : memref<152x32xf32, #tpu.memory_space<vmem>>, vector<1x32xf32>
    %cst_115 = arith.constant 0.000000e+00 : f32
    %396 = vector.shape_cast %394 : vector<2x1xi1> to vector<2x1xi1>
    %397 = vector.broadcast %396 : vector<2x1xi1> to vector<2x32xi1>
    %398 = vector.shape_cast %395 : vector<1x32xf32> to vector<1x32xf32>
    %399 = vector.broadcast %398 : vector<1x32xf32> to vector<2x32xf32>
    %400 = vector.broadcast %cst_115 : f32 to vector<2x32xf32>
    %401 = arith.select %397, %399, %400 : vector<2x32xi1>, vector<2x32xf32>
    %402 = arith.addf %392, %401 : vector<2x32xf32>
    %c4_i32_116 = arith.constant 4 : i32
    %403 = vector.broadcast %c4_i32_116 : i32 to vector<2x1xi32>
    %404 = arith.cmpi eq, %362, %403 : vector<2x1xi32>
    %c39 = arith.constant 39 : index
    %c0_117 = arith.constant 0 : index
    %405 = vector.load %arg2[%c39, %c0_117] : memref<152x32xf32, #tpu.memory_space<vmem>>, vector<1x32xf32>
    %cst_118 = arith.constant 0.000000e+00 : f32
    %406 = vector.shape_cast %404 : vector<2x1xi1> to vector<2x1xi1>
    %407 = vector.broadcast %406 : vector<2x1xi1> to vector<2x32xi1>
    %408 = vector.shape_cast %405 : vector<1x32xf32> to vector<1x32xf32>
    %409 = vector.broadcast %408 : vector<1x32xf32> to vector<2x32xf32>
    %410 = vector.broadcast %cst_118 : f32 to vector<2x32xf32>
    %411 = arith.select %407, %409, %410 : vector<2x32xi1>, vector<2x32xf32>
    %412 = arith.addf %402, %411 : vector<2x32xf32>
    %cst_119 = arith.constant 0.000000e+00 : f32
    %413 = vector.broadcast %cst_119 : f32 to vector<2x32xf32>
    %414 = arith.maximumf %412, %413 : vector<2x32xf32>
    %c48 = arith.constant 48 : index
    %c0_120 = arith.constant 0 : index
    %415 = vector.load %arg2[%c48, %c0_120] : memref<152x32xf32, #tpu.memory_space<vmem>>, vector<32x32xf32>
    %cst_121 = arith.constant dense<0.000000e+00> : vector<2x32xf32>
    %416 = tpu.matmul %414, %415, %cst_121 {dimension_numbers = #tpu.dot_dimension_numbers<[1], [0], [0], [1], [0, 0, 1, 1], [], []>} : vector<2x32xf32>, vector<32x32xf32>, vector<2x32xf32> -> vector<2x32xf32>
    %c80 = arith.constant 80 : index
    %c0_122 = arith.constant 0 : index
    %417 = vector.load %arg2[%c80, %c0_122] : memref<152x32xf32, #tpu.memory_space<vmem>>, vector<1x32xf32>
    %418 = vector.broadcast %417 : vector<1x32xf32> to vector<2x32xf32>
    %419 = arith.addf %416, %418 : vector<2x32xf32>
    %420 = vector.extract_strided_slice %419 {offsets = [0, 0], sizes = [2, 16], strides = [1, 1]} : vector<2x32xf32> to vector<2x16xf32>
    %421 = vector.extract_strided_slice %419 {offsets = [0, 16], sizes = [2, 16], strides = [1, 1]} : vector<2x32xf32> to vector<2x16xf32>
    %cst_123 = arith.constant 5.000000e-01 : f32
    %422 = vector.broadcast %cst_123 : f32 to vector<2x16xf32>
    %423 = arith.mulf %422, %421 : vector<2x16xf32>
    %424 = math.exp %423 : vector<2x16xf32>
    %425 = arith.mulf %1, %424 : vector<2x16xf32>
    %426 = arith.addf %420, %425 : vector<2x16xf32>
    %c88 = arith.constant 88 : index
    %c0_124 = arith.constant 0 : index
    %427 = vector.load %arg2[%c88, %c0_124] : memref<152x32xf32, #tpu.memory_space<vmem>>, vector<16x32xf32>
    %cst_125 = arith.constant dense<0.000000e+00> : vector<2x32xf32>
    %428 = tpu.matmul %426, %427, %cst_125 {dimension_numbers = #tpu.dot_dimension_numbers<[1], [0], [0], [1], [0, 0, 1, 1], [], []>} : vector<2x16xf32>, vector<16x32xf32>, vector<2x32xf32> -> vector<2x32xf32>
    %c104 = arith.constant 104 : index
    %c0_126 = arith.constant 0 : index
    %429 = vector.load %arg2[%c104, %c0_126] : memref<152x32xf32, #tpu.memory_space<vmem>>, vector<1x32xf32>
    %430 = vector.broadcast %429 : vector<1x32xf32> to vector<2x32xf32>
    %431 = arith.addf %428, %430 : vector<2x32xf32>
    %cst_127 = arith.constant 0.000000e+00 : f32
    %432 = vector.broadcast %cst_127 : f32 to vector<2x32xf32>
    %433 = arith.maximumf %431, %432 : vector<2x32xf32>
    %c112 = arith.constant 112 : index
    %c0_128 = arith.constant 0 : index
    %434 = vector.load %arg2[%c112, %c0_128] : memref<152x32xf32, #tpu.memory_space<vmem>>, vector<32x32xf32>
    %cst_129 = arith.constant dense<0.000000e+00> : vector<2x32xf32>
    %435 = tpu.matmul %433, %434, %cst_129 {dimension_numbers = #tpu.dot_dimension_numbers<[1], [0], [0], [1], [0, 0, 1, 1], [], []>} : vector<2x32xf32>, vector<32x32xf32>, vector<2x32xf32> -> vector<2x32xf32>
    %c144 = arith.constant 144 : index
    %c0_130 = arith.constant 0 : index
    %436 = vector.load %arg2[%c144, %c0_130] : memref<152x32xf32, #tpu.memory_space<vmem>>, vector<1x32xf32>
    %437 = vector.broadcast %436 : vector<1x32xf32> to vector<2x32xf32>
    %438 = arith.addf %435, %437 : vector<2x32xf32>
    %439 = tpu.concatenate %438, %419 in 1 : vector<2x32xf32>, vector<2x32xf32> -> vector<2x64xf32>
    %c0_131 = arith.constant 0 : index
    %c0_132 = arith.constant 0 : index
    %440 = vector.load %arg3[%c0_131, %c0_132] : memref<2x64xf32, #tpu.memory_space<vmem>>, vector<2x64xf32>
    tpu.vector_store %arg3[%c0_131, %c0_132], %439 {strides = array<i32>} : memref<2x64xf32, #tpu.memory_space<vmem>>, vector<2x64xf32>,
    return
  }
}

</mosaic_0001>

<llo_original>
// kernel: vae_forward.1
$region0: #{vae_forward.1}
  #allocation0 [shape = 'u32[]', space=smem, size = 0x4, offset = 0x4, fixed_abs, tag = 'smem constant byte address 0x4 - core index']
  #allocation1 [shape = 'u32[72,128]{1,0:T(1,128)}', space=vmem, size = 0x9000, scoped, tag = 'internal scratch']
  %s0 = inlined_call_operand.vmem [shape: s32[2,8], index: 0, kind: input, shape index: {}]
  %s1 = inlined_call_operand.vmem [shape: f32[2,16], index: 1, kind: input, shape index: {}]
  %s2 = inlined_call_operand.vmem [shape: f32[152,32], index: 2, kind: input, shape index: {}]
  %s3 = inlined_call_operand.vmem [shape: f32[2,64], index: 3, kind: output, shape index: {}]
  %s4 = sld [smem:[#allocation0]]
  $region22: #{vae_forward.1} parent=0
    _
  %s6 = ssub.s32 1, %s4
  %s7 = scalar_select 0, %s6, %s4
  // Predicated region
  $region2: #{vae_forward.1} parent=0 // pred_check
    _
  $region3: #{vae_forward.1} parent=0 // pred_check_branch
    %9 = sbr.rel (0) target = $region5
  $region4: #{vae_forward.1} parent=0 // pred_region
    _
  $region5: #{vae_forward.1} parent=0 // pred_fallthru
    _
  // Predicated region
  $region6: #{vae_forward.1} parent=0 // pred_check
    _
  $region7: #{vae_forward.1} parent=0 // pred_check_branch
    %11 = sbr.rel (0) target = $region9
  $region8: #{vae_forward.1} parent=0 // pred_region
    _
  $region9: #{vae_forward.1} parent=0 // pred_fallthru
    _
  // Predicated region
  $region10: #{vae_forward.1} parent=0 // pred_check
    _
  $region11: #{vae_forward.1} parent=0 // pred_check_branch
    %13 = sbr.rel (0) target = $region13
  $region12: #{vae_forward.1} parent=0 // pred_region
    _
  $region13: #{vae_forward.1} parent=0 // pred_fallthru
    _
  %v14 = vld [vmem:[%s0] sm:$0x3]
  %v15 = vld [vmem:[%s1] sm:$0x3]
  %v16 = vld [vmem:[%s2 + $0x28] sm:$0x1]
  %v17 = vperm.slane %v16, 0
  %vm18 = vcmp.eq.s32.totalorder %v14, 0
  %v19 = vld [vmem:[%s2] sm:$0x1]
  %v20 = vsel %vm18, 1, 0
  %21 = vset.pattern.permute.xlu0 0
  %22 = vperm.xlu0 %21, %v20
  %v23 = vpop.permute.xlu0 %22
  %vm24 = vcmp.eq.s32.totalorder %v23, 1
  %v25 = vperm.slane %v19, 0
  %v26 = vsel %vm24, %v25, 0.0
  %v27 = vadd.f32 %v17, %v26
  %vm28 = vcmp.eq.s32.totalorder %v14, 1
  %v29 = vld [vmem:[%s2 + $0x1] sm:$0x1]
  %v30 = vsel %vm28, 1, 0
  %31 = vset.pattern.permute.xlu0 0
  %32 = vperm.xlu0 %31, %v30
  %v33 = vpop.permute.xlu0 %32
  %vm34 = vcmp.eq.s32.totalorder %v33, 1
  %v35 = vperm.slane %v29, 0
  %v36 = vsel %vm34, %v35, 0.0
  %v37 = vadd.f32 %v27, %v36
  %vm38 = vcmp.eq.s32.totalorder %v14, 2
  %v39 = vld [vmem:[%s2 + $0x2] sm:$0x1]
  %v40 = vsel %vm38, 1, 0
  %41 = vset.pattern.permute.xlu0 0
  %42 = vperm.xlu0 %41, %v40
  %v43 = vpop.permute.xlu0 %42
  %vm44 = vcmp.eq.s32.totalorder %v43, 1
  %v45 = vperm.slane %v39, 0
  %v46 = vsel %vm44, %v45, 0.0
  %v47 = vadd.f32 %v37, %v46
  %vm48 = vcmp.eq.s32.totalorder %v14, 3
  %v49 = vld [vmem:[%s2 + $0x3] sm:$0x1]
  %v50 = vsel %vm48, 1, 0
  %51 = vset.pattern.permute.xlu0 0
  %52 = vperm.xlu0 %51, %v50
  %v53 = vpop.permute.xlu0 %52
  %vm54 = vcmp.eq.s32.totalorder %v53, 1
  %v55 = vperm.slane %v49, 0
  %v56 = vsel %vm54, %v55, 0.0
  %v57 = vadd.f32 %v47, %v56
  %vm58 = vcmp.eq.s32.totalorder %v14, 4
  %v59 = vld [vmem:[%s2 + $0x4] sm:$0x1]
  %v60 = vsel %vm58, 1, 0
  %61 = vset.pattern.permute.xlu0 0
  %62 = vperm.xlu0 %61, %v60
  %v63 = vpop.permute.xlu0 %62
  %vm64 = vcmp.eq.s32.totalorder %v63, 1
  %v65 = vperm.slane %v59, 0
  %v66 = vsel %vm64, %v65, 0.0
  %v67 = vadd.f32 %v57, %v66
  %v68 = vld [vmem:[%s2 + $0x5] sm:$0x1]
  %69 = vset.pattern.permute.xlu0 1
  %70 = vperm.xlu0 %69, %v20
  %v71 = vpop.permute.xlu0 %70
  %vm72 = vcmp.eq.s32.totalorder %v71, 1
  %v73 = vperm.slane %v68, 0
  %v74 = vsel %vm72, %v73, 0.0
  %v75 = vadd.f32 %v67, %v74
  %v76 = vld [vmem:[%s2 + $0x6] sm:$0x1]
  %77 = vset.pattern.permute.xlu0 1
  %78 = vperm.xlu0 %77, %v30
  %v79 = vpop.permute.xlu0 %78
  %vm80 = vcmp.eq.s32.totalorder %v79, 1
  %v81 = vperm.slane %v76, 0
  %v82 = vsel %vm80, %v81, 0.0
  %v83 = vadd.f32 %v75, %v82
  %v84 = vld [vmem:[%s2 + $0x7] sm:$0x1]
  %85 = vset.pattern.permute.xlu0 1
  %86 = vperm.xlu0 %85, %v40
  %v87 = vpop.permute.xlu0 %86
  %vm88 = vcmp.eq.s32.totalorder %v87, 1
  %v89 = vperm.slane %v84, 0
  %v90 = vsel %vm88, %v89, 0.0
  %v91 = vadd.f32 %v83, %v90
  %v92 = vld [vmem:[%s2 + $0x8] sm:$0x1]
  %93 = vset.pattern.permute.xlu0 1
  %94 = vperm.xlu0 %93, %v50
  %v95 = vpop.permute.xlu0 %94
  %vm96 = vcmp.eq.s32.totalorder %v95, 1
  %v97 = vperm.slane %v92, 0
  %v98 = vsel %vm96, %v97, 0.0
  %v99 = vadd.f32 %v91, %v98
  %v100 = vld [vmem:[%s2 + $0x9] sm:$0x1]
  %101 = vset.pattern.permute.xlu0 1
  %102 = vperm.xlu0 %101, %v60
  %v103 = vpop.permute.xlu0 %102
  %vm104 = vcmp.eq.s32.totalorder %v103, 1
  %v105 = vperm.slane %v100, 0
  %v106 = vsel %vm104, %v105, 0.0
  %v107 = vadd.f32 %v99, %v106
  %v108 = vld [vmem:[%s2 + $0xa] sm:$0x1]
  %109 = vset.pattern.permute.xlu0 2
  %110 = vperm.xlu0 %109, %v20
  %v111 = vpop.permute.xlu0 %110
  %vm112 = vcmp.eq.s32.totalorder %v111, 1
  %v113 = vperm.slane %v108, 0
  %v114 = vsel %vm112, %v113, 0.0
  %v115 = vadd.f32 %v107, %v114
  %v116 = vld [vmem:[%s2 + $0xb] sm:$0x1]
  %117 = vset.pattern.permute.xlu0 2
  %118 = vperm.xlu0 %117, %v30
  %v119 = vpop.permute.xlu0 %118
  %vm120 = vcmp.eq.s32.totalorder %v119, 1
  %v121 = vperm.slane %v116, 0
  %v122 = vsel %vm120, %v121, 0.0
  %v123 = vadd.f32 %v115, %v122
  %v124 = vld [vmem:[%s2 + $0xc] sm:$0x1]
  %125 = vset.pattern.permute.xlu0 2
  %126 = vperm.xlu0 %125, %v40
  %v127 = vpop.permute.xlu0 %126
  %vm128 = vcmp.eq.s32.totalorder %v127, 1
  %v129 = vperm.slane %v124, 0
  %v130 = vsel %vm128, %v129, 0.0
  %v131 = vadd.f32 %v123, %v130
  %v132 = vld [vmem:[%s2 + $0xd] sm:$0x1]
  %133 = vset.pattern.permute.xlu0 2
  %134 = vperm.xlu0 %133, %v50
  %v135 = vpop.permute.xlu0 %134
  %vm136 = vcmp.eq.s32.totalorder %v135, 1
  %v137 = vperm.slane %v132, 0
  %v138 = vsel %vm136, %v137, 0.0
  %v139 = vadd.f32 %v131, %v138
  %v140 = vld [vmem:[%s2 + $0xe] sm:$0x1]
  %141 = vset.pattern.permute.xlu0 2
  %142 = vperm.xlu0 %141, %v60
  %v143 = vpop.permute.xlu0 %142
  %vm144 = vcmp.eq.s32.totalorder %v143, 1
  %v145 = vperm.slane %v140, 0
  %v146 = vsel %vm144, %v145, 0.0
  %v147 = vadd.f32 %v139, %v146
  %v148 = vld [vmem:[%s2 + $0xf] sm:$0x1]
  %149 = vset.pattern.permute.xlu0 3
  %150 = vperm.xlu0 %149, %v20
  %v151 = vpop.permute.xlu0 %150
  %vm152 = vcmp.eq.s32.totalorder %v151, 1
  %v153 = vperm.slane %v148, 0
  %v154 = vsel %vm152, %v153, 0.0
  %v155 = vadd.f32 %v147, %v154
  %v156 = vld [vmem:[%s2 + $0x10] sm:$0x1]
  %157 = vset.pattern.permute.xlu0 3
  %158 = vperm.xlu0 %157, %v30
  %v159 = vpop.permute.xlu0 %158
  %vm160 = vcmp.eq.s32.totalorder %v159, 1
  %v161 = vperm.slane %v156, 0
  %v162 = vsel %vm160, %v161, 0.0
  %v163 = vadd.f32 %v155, %v162
  %v164 = vld [vmem:[%s2 + $0x11] sm:$0x1]
  %165 = vset.pattern.permute.xlu0 3
  %166 = vperm.xlu0 %165, %v40
  %v167 = vpop.permute.xlu0 %166
  %vm168 = vcmp.eq.s32.totalorder %v167, 1
  %v169 = vperm.slane %v164, 0
  %v170 = vsel %vm168, %v169, 0.0
  %v171 = vadd.f32 %v163, %v170
  %v172 = vld [vmem:[%s2 + $0x12] sm:$0x1]
  %173 = vset.pattern.permute.xlu0 3
  %174 = vperm.xlu0 %173, %v50
  %v175 = vpop.permute.xlu0 %174
  %vm176 = vcmp.eq.s32.totalorder %v175, 1
  %v177 = vperm.slane %v172, 0
  %v178 = vsel %vm176, %v177, 0.0
  %v179 = vadd.f32 %v171, %v178
  %v180 = vld [vmem:[%s2 + $0x13] sm:$0x1]
  %181 = vset.pattern.permute.xlu0 3
  %182 = vperm.xlu0 %181, %v60
  %v183 = vpop.permute.xlu0 %182
  %vm184 = vcmp.eq.s32.totalorder %v183, 1
  %v185 = vperm.slane %v180, 0
  %v186 = vsel %vm184, %v185, 0.0
  %v187 = vadd.f32 %v179, %v186
  %v188 = vld [vmem:[%s2 + $0x14] sm:$0x1]
  %189 = vset.pattern.permute.xlu0 4
  %190 = vperm.xlu0 %189, %v20
  %v191 = vpop.permute.xlu0 %190
  %vm192 = vcmp.eq.s32.totalorder %v191, 1
  %v193 = vperm.slane %v188, 0
  %v194 = vsel %vm192, %v193, 0.0
  %v195 = vadd.f32 %v187, %v194
  %v196 = vld [vmem:[%s2 + $0x15] sm:$0x1]
  %197 = vset.pattern.permute.xlu0 4
  %198 = vperm.xlu0 %197, %v30
  %v199 = vpop.permute.xlu0 %198
  %vm200 = vcmp.eq.s32.totalorder %v199, 1
  %v201 = vperm.slane %v196, 0
  %v202 = vsel %vm200, %v201, 0.0
  %v203 = vadd.f32 %v195, %v202
  %v204 = vld [vmem:[%s2 + $0x16] sm:$0x1]
  %205 = vset.pattern.permute.xlu0 4
  %206 = vperm.xlu0 %205, %v40
  %v207 = vpop.permute.xlu0 %206
  %vm208 = vcmp.eq.s32.totalorder %v207, 1
  %v209 = vperm.slane %v204, 0
  %v210 = vsel %vm208, %v209, 0.0
  %v211 = vadd.f32 %v203, %v210
  %v212 = vld [vmem:[%s2 + $0x17] sm:$0x1]
  %213 = vset.pattern.permute.xlu0 4
  %214 = vperm.xlu0 %213, %v50
  %v215 = vpop.permute.xlu0 %214
  %vm216 = vcmp.eq.s32.totalorder %v215, 1
  %v217 = vperm.slane %v212, 0
  %v218 = vsel %vm216, %v217, 0.0
  %v219 = vadd.f32 %v211, %v218
  %v220 = vld [vmem:[%s2 + $0x18] sm:$0x1]
  %221 = vset.pattern.permute.xlu0 4
  %222 = vperm.xlu0 %221, %v60
  %v223 = vpop.permute.xlu0 %222
  %vm224 = vcmp.eq.s32.totalorder %v223, 1
  %v225 = vperm.slane %v220, 0
  %v226 = vsel %vm224, %v225, 0.0
  %v227 = vadd.f32 %v219, %v226
  %v228 = vld [vmem:[%s2 + $0x19] sm:$0x1]
  %229 = vset.pattern.permute.xlu0 5
  %230 = vperm.xlu0 %229, %v20
  %v231 = vpop.permute.xlu0 %230
  %vm232 = vcmp.eq.s32.totalorder %v231, 1
  %v233 = vperm.slane %v228, 0
  %v234 = vsel %vm232, %v233, 0.0
  %v235 = vadd.f32 %v227, %v234
  %v236 = vld [vmem:[%s2 + $0x1a] sm:$0x1]
  %237 = vset.pattern.permute.xlu0 5
  %238 = vperm.xlu0 %237, %v30
  %v239 = vpop.permute.xlu0 %238
  %vm240 = vcmp.eq.s32.totalorder %v239, 1
  %v241 = vperm.slane %v236, 0
  %v242 = vsel %vm240, %v241, 0.0
  %v243 = vadd.f32 %v235, %v242
  %v244 = vld [vmem:[%s2 + $0x1b] sm:$0x1]
  %245 = vset.pattern.permute.xlu0 5
  %246 = vperm.xlu0 %245, %v40
  %v247 = vpop.permute.xlu0 %246
  %vm248 = vcmp.eq.s32.totalorder %v247, 1
  %v249 = vperm.slane %v244, 0
  %v250 = vsel %vm248, %v249, 0.0
  %v251 = vadd.f32 %v243, %v250
  %v252 = vld [vmem:[%s2 + $0x1c] sm:$0x1]
  %253 = vset.pattern.permute.xlu0 5
  %254 = vperm.xlu0 %253, %v50
  %v255 = vpop.permute.xlu0 %254
  %vm256 = vcmp.eq.s32.totalorder %v255, 1
  %v257 = vperm.slane %v252, 0
  %v258 = vsel %vm256, %v257, 0.0
  %v259 = vadd.f32 %v251, %v258
  %v260 = vld [vmem:[%s2 + $0x1d] sm:$0x1]
  %261 = vset.pattern.permute.xlu0 5
  %262 = vperm.xlu0 %261, %v60
  %v263 = vpop.permute.xlu0 %262
  %vm264 = vcmp.eq.s32.totalorder %v263, 1
  %v265 = vperm.slane %v260, 0
  %v266 = vsel %vm264, %v265, 0.0
  %v267 = vadd.f32 %v259, %v266
  %v268 = vld [vmem:[%s2 + $0x1e] sm:$0x1]
  %269 = vset.pattern.permute.xlu0 6
  %270 = vperm.xlu0 %269, %v20
  %v271 = vpop.permute.xlu0 %270
  %vm272 = vcmp.eq.s32.totalorder %v271, 1
  %v273 = vperm.slane %v268, 0
  %v274 = vsel %vm272, %v273, 0.0
  %v275 = vadd.f32 %v267, %v274
  %v276 = vld [vmem:[%s2 + $0x1f] sm:$0x1]
  %277 = vset.pattern.permute.xlu0 6
  %278 = vperm.xlu0 %277, %v30
  %v279 = vpop.permute.xlu0 %278
  %vm280 = vcmp.eq.s32.totalorder %v279, 1
  %v281 = vperm.slane %v276, 0
  %v282 = vsel %vm280, %v281, 0.0
  %v283 = vadd.f32 %v275, %v282
  %v284 = vld [vmem:[%s2 + $0x20] sm:$0x1]
  %285 = vset.pattern.permute.xlu0 6
  %286 = vperm.xlu0 %285, %v40
  %v287 = vpop.permute.xlu0 %286
  %vm288 = vcmp.eq.s32.totalorder %v287, 1
  %v289 = vperm.slane %v284, 0
  %v290 = vsel %vm288, %v289, 0.0
  %v291 = vadd.f32 %v283, %v290
  %v292 = vld [vmem:[%s2 + $0x21] sm:$0x1]
  %293 = vset.pattern.permute.xlu0 6
  %294 = vperm.xlu0 %293, %v50
  %v295 = vpop.permute.xlu0 %294
  %vm296 = vcmp.eq.s32.totalorder %v295, 1
  %v297 = vperm.slane %v292, 0
  %v298 = vsel %vm296, %v297, 0.0
  %v299 = vadd.f32 %v291, %v298
  %v300 = vld [vmem:[%s2 + $0x22] sm:$0x1]
  %301 = vset.pattern.permute.xlu0 6
  %302 = vperm.xlu0 %301, %v60
  %v303 = vpop.permute.xlu0 %302
  %vm304 = vcmp.eq.s32.totalorder %v303, 1
  %v305 = vperm.slane %v300, 0
  %v306 = vsel %vm304, %v305, 0.0
  %v307 = vadd.f32 %v299, %v306
  %v308 = vld [vmem:[%s2 + $0x23] sm:$0x1]
  %309 = vset.pattern.permute.xlu0 7
  %310 = vperm.xlu0 %309, %v20
  %v311 = vpop.permute.xlu0 %310
  %vm312 = vcmp.eq.s32.totalorder %v311, 1
  %v313 = vperm.slane %v308, 0
  %v314 = vsel %vm312, %v313, 0.0
  %v315 = vadd.f32 %v307, %v314
  %v316 = vld [vmem:[%s2 + $0x24] sm:$0x1]
  %317 = vset.pattern.permute.xlu0 7
  %318 = vperm.xlu0 %317, %v30
  %v319 = vpop.permute.xlu0 %318
  %vm320 = vcmp.eq.s32.totalorder %v319, 1
  %v321 = vperm.slane %v316, 0
  %v322 = vsel %vm320, %v321, 0.0
  %v323 = vadd.f32 %v315, %v322
  %v324 = vld [vmem:[%s2 + $0x25] sm:$0x1]
  %325 = vset.pattern.permute.xlu0 7
  %326 = vperm.xlu0 %325, %v40
  %v327 = vpop.permute.xlu0 %326
  %vm328 = vcmp.eq.s32.totalorder %v327, 1
  %v329 = vperm.slane %v324, 0
  %v330 = vsel %vm328, %v329, 0.0
  %v331 = vadd.f32 %v323, %v330
  %v332 = vld [vmem:[%s2 + $0x26] sm:$0x1]
  %333 = vset.pattern.permute.xlu0 7
  %334 = vperm.xlu0 %333, %v50
  %v335 = vpop.permute.xlu0 %334
  %vm336 = vcmp.eq.s32.totalorder %v335, 1
  %v337 = vperm.slane %v332, 0
  %v338 = vsel %vm336, %v337, 0.0
  %v339 = vadd.f32 %v331, %v338
  %v340 = vld [vmem:[%s2 + $0x27] sm:$0x1]
  %341 = vset.pattern.permute.xlu0 7
  %342 = vperm.xlu0 %341, %v60
  %v343 = vpop.permute.xlu0 %342
  %vm344 = vcmp.eq.s32.totalorder %v343, 1
  %v345 = vperm.slane %v340, 0
  %v346 = vsel %vm344, %v345, 0.0
  %v347 = vadd.f32 %v339, %v346
  %v348 = vmax.f32 %v347, 0.0
  %v349 = vld [vmem:[%s2 + $0x30] sm:$0xff]
  %v350 = vld [vmem:[%s2 + $0x38] sm:$0xff]
  %v351 = vld [vmem:[%s2 + $0x40] sm:$0xff]
  %v352 = vld [vmem:[%s2 + $0x48] sm:$0xff]
  %v353 = vld [vmem:[%s2 + $0x50] sm:$0x1]
  %v354 = vperm.slane %v353, 0
  %vm355 = vcmask 261120
  %v357 = vsel %vm355, %v348, 0
  %359 = vmatpush.msra.mxu0 0.0
  %360 = vmatpush.msra.mxu0 0.0
  %361 = vmatpush.msra.mxu0 0.0
  %362 = vmatpush.msra.mxu0 0.0
  %363 = vmatpush.msra.mxu0 0.0
  %364 = vmatpush.msra.mxu0 0.0
  %365 = vmatpush.msra.mxu0 0.0
  %366 = vmatpush.msra.mxu0 0.0
  %367 = vmatpush.msra.mxu0 0.0
  %368 = vmatpush.msra.mxu0 0.0
  %369 = vmatpush.msra.mxu0 0.0
  %370 = vmatpush.msra.mxu0 0.0
  %371 = vmatpush.msra.mxu0 %v352
  %372 = vmatpush.msra.mxu0 %v351
  %373 = vmatpush.msra.mxu0 %v350
  %374 = vmatpush.msra.mxu0 %v349
  %375 = vmatmul.f32.gmra.mxu0 %v357
  %v376 = vpop.f32.mrf.mxu0
  %v377 = vadd.f32 %v354, %v376
  %378 = vdwg.mxu0
  %v379 = vmul.f32 %v377, 0.5
  %v380 = vmul.f32 %v379, 1.442695
  %v381 = vpow.pop %v380
  %383 = vrot.lane.b32.xlu0 %v381, 112
  %v384 = vpop.permute.xlu0 %383
  %v386 = vmul.f32 %v15, %v384
  %v387 = vadd.f32 %v377, %v386
  %v388 = vld [vmem:[%s2 + $0x58] sm:$0xff]
  %v389 = vld [vmem:[%s2 + $0x60] sm:$0xff]
  %v390 = vld [vmem:[%s2 + $0x68] sm:$0x1]
  %v391 = vperm.slane %v390, 0
  %vm392 = vcmask 130048
  %v394 = vsel %vm392, %v387, 0
  %396 = vmatpush.msra.mxu0 0.0
  %397 = vmatpush.msra.mxu0 0.0
  %398 = vmatpush.msra.mxu0 0.0
  %399 = vmatpush.msra.mxu0 0.0
  %400 = vmatpush.msra.mxu0 0.0
  %401 = vmatpush.msra.mxu0 0.0
  %402 = vmatpush.msra.mxu0 0.0
  %403 = vmatpush.msra.mxu0 0.0
  %404 = vmatpush.msra.mxu0 0.0
  %405 = vmatpush.msra.mxu0 0.0
  %406 = vmatpush.msra.mxu0 0.0
  %407 = vmatpush.msra.mxu0 0.0
  %408 = vmatpush.msra.mxu0 0.0
  %409 = vmatpush.msra.mxu0 0.0
  %410 = vmatpush.msra.mxu0 %v389
  %411 = vmatpush.msra.mxu0 %v388
  %412 = vmatmul.f32.gmra.mxu0 %v394
  %v413 = vpop.f32.mrf.mxu0
  %v414 = vadd.f32 %v391, %v413
  %415 = vdwg.mxu0
  %v416 = vmax.f32 %v414, 0.0
  %v417 = vld [vmem:[%s2 + $0x70] sm:$0xff]
  %v418 = vld [vmem:[%s2 + $0x78] sm:$0xff]
  %v419 = vld [vmem:[%s2 + $0x80] sm:$0xff]
  %v420 = vld [vmem:[%s2 + $0x88] sm:$0xff]
  %v421 = vld [vmem:[%s2 + $0x90] sm:$0x1]
  %v422 = vperm.slane %v421, 0
  %v424 = vsel %vm355, %v416, 0
  %426 = vmatpush.msra.mxu0 0.0
  %427 = vmatpush.msra.mxu0 0.0
  %428 = vmatpush.msra.mxu0 0.0
  %429 = vmatpush.msra.mxu0 0.0
  %430 = vmatpush.msra.mxu0 0.0
  %431 = vmatpush.msra.mxu0 0.0
  %432 = vmatpush.msra.mxu0 0.0
  %433 = vmatpush.msra.mxu0 0.0
  %434 = vmatpush.msra.mxu0 0.0
  %435 = vmatpush.msra.mxu0 0.0
  %436 = vmatpush.msra.mxu0 0.0
  %437 = vmatpush.msra.mxu0 0.0
  %438 = vmatpush.msra.mxu0 %v420
  %439 = vmatpush.msra.mxu0 %v419
  %440 = vmatpush.msra.mxu0 %v418
  %441 = vmatpush.msra.mxu0 %v417
  %442 = vmatmul.f32.gmra.mxu0 %v424
  %v443 = vpop.f32.mrf.mxu0
  %v444 = vadd.f32 %v422, %v443
  %445 = vdwg.mxu0
  %447 = vrot.lane.b32.xlu0 %v377, 32
  %v448 = vpop.permute.xlu0 %447
  %v450 = vsel %vm355, %v444, %v448
  %vm451 = vcmask 517120
  %452 = vst.msk [vmem:[%s3] sm:$0x3] %vm451, %v450
  // Predicated region
  $region14: #{vae_forward.1} parent=0 // pred_check
    _
  $region15: #{vae_forward.1} parent=0 // pred_check_branch
    %454 = sbr.rel (0) target = $region17
  $region16: #{vae_forward.1} parent=0 // pred_region
    _
  $region17: #{vae_forward.1} parent=0 // pred_fallthru
    _
  // Predicated region
  $region18: #{vae_forward.1} parent=0 // pred_check
    _
  $region19: #{vae_forward.1} parent=0 // pred_check_branch
    %456 = sbr.rel (0) target = $region21
  $region20: #{vae_forward.1} parent=0 // pred_region
    _
  $region21: #{vae_forward.1} parent=0 // pred_fallthru
    _

</llo_original>
